<compile_context>
chip_gen: v7x
topology: tpu7x:2x2x1
jax: 0.10.0
libtpu: 0.0.40
codegen_flags: <defaults>
</compile_context>

<pallas_src>
import numpy as np
import jax
import jax.numpy as jnp
from jax.experimental import pallas as pl
from jax.experimental.pallas import tpu as pltpu

INPUT_DIM = 43       # L
C_OUT = 16           # conv output channels
POOL_OUT = 4         # AdaptiveAvgPool1d target length
HIDDEN = 16          # classifier hidden size
MAX_B_BLK = 1024     # max batch tile (lane axis); multiple of 128
CONV_CHUNK = 256     # rows of S / cols of MT per accumulation step (256 = v6e/v7x MXU height)


def _round_up(a, m):
    return ((a + m - 1) // m) * m


def adaptive_avg_pool_matrix(length, out_size):
    """(L, out) matrix reproducing torch.nn.AdaptiveAvgPool1d bucket boundaries."""
    P = np.zeros((length, out_size), dtype=np.float32)
    for i in range(out_size):
        s = (i * length) // out_size
        e = -((-(i + 1) * length) // out_size)  # ceil((i+1)*L/out)
        P[s:e, i] = 1.0 / float(e - s)
    return P


# ---------------------------------------------------------------------------
# Kernel: lane-dense, batch on the lane axis, conv activation kept chunked.
#   xa  : (L+1, Bt)      bf16  input (transposed) with a trailing row of ones
#   S   : (R, L+1)       bf16  banded conv matrix with bias column, R = pad(688)
#   MT  : (H, R)         bf16  (pool @ W1)^T, zero-padded to R
#   b1  : (H, 1)         f32
#   w2  : (H, 1)         f32
#   b2  : (1, 1)         f32
#   out : (1, Bt)        f32
# ---------------------------------------------------------------------------
def cnn_kernel(xa_ref, S_ref, MT_ref, b1_ref, w2_ref, b2_ref, o_ref):
    xa = xa_ref[...]                                    # (L+1, Bt) bf16
    bt = xa.shape[1]
    n_chunks = S_ref.shape[0] // CONV_CHUNK

    # Conv1d(1->16,k=3,p=1)+bias + ReLU + AdaptiveAvgPool1d(4) + Linear(64,16),
    # accumulated chunk-by-chunk so the (16*43, Bt) conv slab never round-trips VMEM.
    h = jnp.zeros((HIDDEN, bt), jnp.float32)
    for c in range(n_chunks):
        s_blk = S_ref[pl.ds(c * CONV_CHUNK, CONV_CHUNK), :]        # (CHUNK, L+1) bf16
        conv = jnp.dot(s_blk, xa, preferred_element_type=jnp.float32)
        conv = jnp.maximum(conv, 0.0).astype(jnp.bfloat16)         # ReLU
        mt_blk = MT_ref[:, pl.ds(c * CONV_CHUNK, CONV_CHUNK)]      # (H, CHUNK) bf16
        h = h + jnp.dot(mt_blk, conv, preferred_element_type=jnp.float32)

    h = jnp.maximum(h + b1_ref[...], 0.0)               # Linear bias + ReLU
    # Dropout(0.3) is identity at inference time.

    # Linear(16,1): exact f32 broadcast-mul + sublane reduction (no MXU pass).
    logits = jnp.sum(w2_ref[...] * h, axis=0, keepdims=True) + b2_ref[...]   # (1, Bt)

    # Numerically stable sigmoid.
    e = jnp.exp(-jnp.abs(logits))
    o_ref[...] = jnp.where(logits >= 0.0,
                           1.0 / (1.0 + e),
                           e / (1.0 + e)).astype(o_ref.dtype)


def _fold_params(params):
    """Fold conv weights+bias into a banded matrix and pool@W1 into one matrix."""
    wc, bc, pool, w1, b1, w2, b2 = params
    L = INPUT_DIM
    # Shift matrices: (D @ x)[l] = x[l-1] / x[l] / x[l+1], zero-padded at the ends.
    shifts = jnp.stack(
        [jnp.eye(L, k=-1), jnp.eye(L), jnp.eye(L, k=1)], axis=0
    ).astype(jnp.float32)                                            # (3, L, L)
    S = jnp.einsum('kc,klm->clm', wc, shifts,
                   precision='highest').reshape(C_OUT * L, L)        # (C*L, L)
    bcol = jnp.repeat(bc.reshape(C_OUT), L).reshape(C_OUT * L, 1)    # conv bias column
    Sb = jnp.concatenate([S, bcol], axis=1)                          # (C*L, L+1)

    # pooled[c, i] -> flat[c*4 + i]; fold pool into W1 (channel-major preserved).
    w1r = w1.reshape(C_OUT, POOL_OUT, HIDDEN)
    MT = jnp.einsum('li,cih->clh', pool, w1r,
                    precision='highest').reshape(C_OUT * L, HIDDEN).T  # (H, C*L)

    # Pad the contraction dim (C*L = 688) to a multiple of CONV_CHUNK with zeros
    # (exact: zero S rows give relu(0)=0 and the matching MT columns are zero).
    rows = C_OUT * L
    rows_pad = _round_up(rows, CONV_CHUNK)
    Sb = jnp.pad(Sb, ((0, rows_pad - rows), (0, 0)))
    MT = jnp.pad(MT, ((0, 0), (0, rows_pad - rows)))

    return (Sb.astype(jnp.bfloat16), MT.astype(jnp.bfloat16),
            b1.reshape(HIDDEN, 1), w2.reshape(HIDDEN, 1), b2.reshape(1, 1))


def cnn_forward(x, params, max_b_blk=MAX_B_BLK):
    B, L = x.shape
    assert L == INPUT_DIM

    # Lane-dense batch tile; keep grid >= 2 when the batch allows it so both
    # TensorCores get a share of the "parallel" grid axis on v7x.
    half = -(-B // 2)
    b_blk = max(128, min(max_b_blk, _round_up(half, 128)))
    B_pad = _round_up(B, b_blk)

    Sb, MT, b1c, w2c, b2r = _fold_params(params)
    Ka = INPUT_DIM + 1                       # 43 inputs + 1 "ones" row for the bias
    rows_pad = Sb.shape[0]

    # Batch on lanes, bf16 (halves input HBM traffic), ones row rides the conv bias.
    xa = jnp.concatenate([x.T, jnp.ones((1, B), x.dtype)], axis=0).astype(jnp.bfloat16)
    xa = jnp.pad(xa, ((0, 0), (0, B_pad - B)))                       # (Ka, B_pad)

    const = lambda i: (0, 0)
    out = pl.pallas_call(
        cnn_kernel,
        out_shape=jax.ShapeDtypeStruct((1, B_pad), jnp.float32),
        grid_spec=pltpu.PrefetchScalarGridSpec(
            num_scalar_prefetch=0,
            grid=(B_pad // b_blk,),
            in_specs=[
                pl.BlockSpec((Ka, b_blk), lambda i: (0, i)),         # x tile (+ones row)
                pl.BlockSpec((rows_pad, Ka), const),                 # S (bias folded)
                pl.BlockSpec((HIDDEN, rows_pad), const),             # (pool@W1)^T
                pl.BlockSpec((HIDDEN, 1), const),                    # b1
                pl.BlockSpec((HIDDEN, 1), const),                    # w2 column
                pl.BlockSpec((1, 1), const),                         # b2
            ],
            out_specs=pl.BlockSpec((1, b_blk), lambda i: (0, i)),    # lane-dense
        ),
        compiler_params=pltpu.CompilerParams(
            dimension_semantics=("parallel",)),
    )(xa, Sb, MT, b1c, w2c, b2r)

    return out[0, :B].reshape(B, 1)


def reference_forward(x, params):
    """Pure-JAX f32 (HIGHEST) reference mirroring the PyTorch module (eval mode)."""
    wc, bc, pool, w1, b1, w2, b2 = params
    xp = jnp.pad(x, ((0, 0), (1, 1)))
    conv = (xp[:, 0:-2, None] * wc[0] + xp[:, 1:-1, None] * wc[1]
            + xp[:, 2:, None] * wc[2] + bc)                      # (B, L, 16)
    conv = jnp.maximum(conv, 0.0)
    pooled = jnp.einsum('blc,li->bci', conv, pool, precision='highest')  # (B, 16, 4)
    flat = pooled.reshape(x.shape[0], -1)                        # (B, 64)
    h = jnp.maximum(jnp.dot(flat, w1, precision='highest') + b1, 0.0)
    logits = jnp.dot(h, w2, precision='highest') + b2
    return jax.nn.sigmoid(logits)


def init_params(key):
    k = jax.random.split(key, 6)
    wc = jax.random.uniform(k[0], (3, C_OUT), jnp.float32, -0.5, 0.5)   # Conv1d weight (K, C_out)
    bc = jax.random.uniform(k[1], (1, C_OUT), jnp.float32, -0.5, 0.5)   # Conv1d bias
    pool = jnp.asarray(adaptive_avg_pool_matrix(INPUT_DIM, POOL_OUT))   # fixed pooling matrix
    w1 = jax.random.uniform(k[2], (C_OUT * POOL_OUT, HIDDEN), jnp.float32, -0.125, 0.125)
    b1 = jax.random.uniform(k[3], (1, HIDDEN), jnp.float32, -0.125, 0.125)
    w2 = jax.random.uniform(k[4], (HIDDEN, 1), jnp.float32, -0.25, 0.25)
    b2 = jax.random.uniform(k[5], (1, 1), jnp.float32, -0.25, 0.25)
    return (wc, bc, pool, w1, b1, w2, b2)


if __name__ == "__main__":
    key = jax.random.PRNGKey(0)
    kx, kp = jax.random.split(key)
    params = init_params(kp)

    fwd = jax.jit(cnn_forward)

    # Small deterministic check (single lane-dense tile, padded to 128 lanes).
    B = 16
    x = jax.random.normal(kx, (B, INPUT_DIM), jnp.float32)
    out = jax.block_until_ready(fwd(x, params))
    ref = reference_forward(x, params)
    assert out.shape == (B, 1)
    # Kernel runs bf16 single-pass MXU math; compare vs f32-HIGHEST reference.
    np.testing.assert_allclose(np.asarray(out), np.asarray(ref), atol=1e-2, rtol=1e-2)

    # Multi-tile check: exercises grid > 1 (both TCs on v7x) and batch padding.
    B2 = 600
    x2 = jax.random.normal(jax.random.PRNGKey(1), (B2, INPUT_DIM), jnp.float32)
    out2 = jax.block_until_ready(fwd(x2, params))
    ref2 = reference_forward(x2, params)
    np.testing.assert_allclose(np.asarray(out2), np.asarray(ref2), atol=1e-2, rtol=1e-2)

    print("KERNEL_OK")
</pallas_src>

<mosaic_0001>
module attributes {stable_mosaic.version = 11 : i64} {
  func.func @cnn_kernel(%arg0: i32, %arg1: memref<44x128xbf16, #tpu.memory_space<vmem>>, %arg2: memref<768x44xbf16, #tpu.memory_space<vmem>>, %arg3: memref<16x768xbf16, #tpu.memory_space<vmem>>, %arg4: memref<16x1xf32, #tpu.memory_space<vmem>>, %arg5: memref<16x1xf32, #tpu.memory_space<vmem>>, %arg6: memref<1x1xf32, #tpu.memory_space<vmem>>, %arg7: memref<1x128xf32, #tpu.memory_space<vmem>>) attributes {dimension_semantics = [#tpu.dimension_semantics<parallel>], iteration_bounds = array<i64: 1>, scalar_prefetch = 0 : i64, scratch_operands = 0 : i64, tpu.core_type = #tpu.core_type<tc>, window_params = [{transform_indices = @transform_0, window_bounds = array<i64: 44, 128>}, {pipeline_mode = #tpu.pipeline_mode<synchronous>, transform_indices = @transform_1, window_bounds = array<i64: 768, 44>}, {pipeline_mode = #tpu.pipeline_mode<synchronous>, transform_indices = @transform_2, window_bounds = array<i64: 16, 768>}, {pipeline_mode = #tpu.pipeline_mode<synchronous>, transform_indices = @transform_3, window_bounds = array<i64: 16, 1>}, {pipeline_mode = #tpu.pipeline_mode<synchronous>, transform_indices = @transform_4, window_bounds = array<i64: 16, 1>}, {pipeline_mode = #tpu.pipeline_mode<synchronous>, transform_indices = @transform_5, window_bounds = array<i64: 1, 1>}, {transform_indices = @transform_6, window_bounds = array<i64: 1, 128>}]} {
    %c0 = arith.constant 0 : index
    %c0_0 = arith.constant 0 : index
    %0 = vector.load %arg1[%c0, %c0_0] : memref<44x128xbf16, #tpu.memory_space<vmem>>, vector<44x128xbf16>
    %cst = arith.constant 0.000000e+00 : f32
    %1 = vector.broadcast %cst : f32 to vector<16x128xf32>
    %c0_1 = arith.constant 0 : index
    %c0_2 = arith.constant 0 : index
    %2 = vector.load %arg2[%c0_1, %c0_2] : memref<768x44xbf16, #tpu.memory_space<vmem>>, vector<256x44xbf16>
    %cst_3 = arith.constant dense<0.000000e+00> : vector<256x128xf32>
    %3 = tpu.matmul %2, %0, %cst_3 {dimension_numbers = #tpu.dot_dimension_numbers<[1], [0], [0], [1], [0, 0, 1, 1], [], []>} : vector<256x44xbf16>, vector<44x128xbf16>, vector<256x128xf32> -> vector<256x128xf32>
    %cst_4 = arith.constant 0.000000e+00 : f32
    %4 = vector.broadcast %cst_4 : f32 to vector<256x128xf32>
    %5 = arith.maximumf %3, %4 : vector<256x128xf32>
    %6 = arith.truncf %5 : vector<256x128xf32> to vector<256x128xbf16>
    %c0_5 = arith.constant 0 : index
    %c0_6 = arith.constant 0 : index
    %7 = vector.load %arg3[%c0_5, %c0_6] : memref<16x768xbf16, #tpu.memory_space<vmem>>, vector<16x256xbf16>
    %cst_7 = arith.constant dense<0.000000e+00> : vector<16x128xf32>
    %8 = tpu.matmul %7, %6, %cst_7 {dimension_numbers = #tpu.dot_dimension_numbers<[1], [0], [0], [1], [0, 0, 1, 1], [], []>} : vector<16x256xbf16>, vector<256x128xbf16>, vector<16x128xf32> -> vector<16x128xf32>
    %9 = arith.addf %1, %8 : vector<16x128xf32>
    %c256 = arith.constant 256 : index
    %c0_8 = arith.constant 0 : index
    %10 = vector.load %arg2[%c256, %c0_8] : memref<768x44xbf16, #tpu.memory_space<vmem>>, vector<256x44xbf16>
    %cst_9 = arith.constant dense<0.000000e+00> : vector<256x128xf32>
    %11 = tpu.matmul %10, %0, %cst_9 {dimension_numbers = #tpu.dot_dimension_numbers<[1], [0], [0], [1], [0, 0, 1, 1], [], []>} : vector<256x44xbf16>, vector<44x128xbf16>, vector<256x128xf32> -> vector<256x128xf32>
    %cst_10 = arith.constant 0.000000e+00 : f32
    %12 = vector.broadcast %cst_10 : f32 to vector<256x128xf32>
    %13 = arith.maximumf %11, %12 : vector<256x128xf32>
    %14 = arith.truncf %13 : vector<256x128xf32> to vector<256x128xbf16>
    %c0_11 = arith.constant 0 : index
    %c256_12 = arith.constant 256 : index
    %15 = vector.load %arg3[%c0_11, %c256_12] : memref<16x768xbf16, #tpu.memory_space<vmem>>, vector<16x256xbf16>
    %cst_13 = arith.constant dense<0.000000e+00> : vector<16x128xf32>
    %16 = tpu.matmul %15, %14, %cst_13 {dimension_numbers = #tpu.dot_dimension_numbers<[1], [0], [0], [1], [0, 0, 1, 1], [], []>} : vector<16x256xbf16>, vector<256x128xbf16>, vector<16x128xf32> -> vector<16x128xf32>
    %17 = arith.addf %9, %16 : vector<16x128xf32>
    %c512 = arith.constant 512 : index
    %c0_14 = arith.constant 0 : index
    %18 = vector.load %arg2[%c512, %c0_14] : memref<768x44xbf16, #tpu.memory_space<vmem>>, vector<256x44xbf16>
    %cst_15 = arith.constant dense<0.000000e+00> : vector<256x128xf32>
    %19 = tpu.matmul %18, %0, %cst_15 {dimension_numbers = #tpu.dot_dimension_numbers<[1], [0], [0], [1], [0, 0, 1, 1], [], []>} : vector<256x44xbf16>, vector<44x128xbf16>, vector<256x128xf32> -> vector<256x128xf32>
    %cst_16 = arith.constant 0.000000e+00 : f32
    %20 = vector.broadcast %cst_16 : f32 to vector<256x128xf32>
    %21 = arith.maximumf %19, %20 : vector<256x128xf32>
    %22 = arith.truncf %21 : vector<256x128xf32> to vector<256x128xbf16>
    %c0_17 = arith.constant 0 : index
    %c512_18 = arith.constant 512 : index
    %23 = vector.load %arg3[%c0_17, %c512_18] : memref<16x768xbf16, #tpu.memory_space<vmem>>, vector<16x256xbf16>
    %cst_19 = arith.constant dense<0.000000e+00> : vector<16x128xf32>
    %24 = tpu.matmul %23, %22, %cst_19 {dimension_numbers = #tpu.dot_dimension_numbers<[1], [0], [0], [1], [0, 0, 1, 1], [], []>} : vector<16x256xbf16>, vector<256x128xbf16>, vector<16x128xf32> -> vector<16x128xf32>
    %25 = arith.addf %17, %24 : vector<16x128xf32>
    %c0_20 = arith.constant 0 : index
    %c0_21 = arith.constant 0 : index
    %26 = vector.load %arg4[%c0_20, %c0_21] : memref<16x1xf32, #tpu.memory_space<vmem>>, vector<16x1xf32>
    %27 = vector.broadcast %26 : vector<16x1xf32> to vector<16x128xf32>
    %28 = arith.addf %25, %27 : vector<16x128xf32>
    %cst_22 = arith.constant 0.000000e+00 : f32
    %29 = vector.broadcast %cst_22 : f32 to vector<16x128xf32>
    %30 = arith.maximumf %28, %29 : vector<16x128xf32>
    %c0_23 = arith.constant 0 : index
    %c0_24 = arith.constant 0 : index
    %31 = vector.load %arg5[%c0_23, %c0_24] : memref<16x1xf32, #tpu.memory_space<vmem>>, vector<16x1xf32>
    %32 = vector.broadcast %31 : vector<16x1xf32> to vector<16x128xf32>
    %33 = arith.mulf %32, %30 : vector<16x128xf32>
    %cst_25 = arith.constant dense<0.000000e+00> : vector<128xf32>
    %34 = vector.multi_reduction <add>, %33, %cst_25 [0] : vector<16x128xf32> to vector<128xf32>
    %35 = vector.shape_cast %34 : vector<128xf32> to vector<1x128xf32>
    %c0_26 = arith.constant 0 : index
    %c0_27 = arith.constant 0 : index
    %36 = vector.load %arg6[%c0_26, %c0_27] : memref<1x1xf32, #tpu.memory_space<vmem>>, vector<1x1xf32>
    %37 = vector.broadcast %36 : vector<1x1xf32> to vector<1x128xf32>
    %38 = arith.addf %35, %37 : vector<1x128xf32>
    %39 = math.absf %38 : vector<1x128xf32>
    %cst_28 = arith.constant 0.000000e+00 : f32
    %40 = vector.broadcast %cst_28 : f32 to vector<1x128xf32>
    %41 = arith.subf %40, %39 : vector<1x128xf32>
    %42 = math.exp %41 : vector<1x128xf32>
    %cst_29 = arith.constant 0.000000e+00 : f32
    %43 = vector.broadcast %cst_29 : f32 to vector<1x128xf32>
    %44 = arith.cmpf oge, %38, %43 : vector<1x128xf32>
    %cst_30 = arith.constant 1.000000e+00 : f32
    %45 = vector.broadcast %cst_30 : f32 to vector<1x128xf32>
    %46 = arith.addf %45, %42 : vector<1x128xf32>
    %cst_31 = arith.constant 1.000000e+00 : f32
    %47 = vector.broadcast %cst_31 : f32 to vector<1x128xf32>
    %48 = arith.divf %47, %46 : vector<1x128xf32>
    %cst_32 = arith.constant 1.000000e+00 : f32
    %49 = vector.broadcast %cst_32 : f32 to vector<1x128xf32>
    %50 = arith.addf %49, %42 : vector<1x128xf32>
    %51 = arith.divf %42, %50 : vector<1x128xf32>
    %52 = arith.select %44, %48, %51 : vector<1x128xi1>, vector<1x128xf32>
    %c0_33 = arith.constant 0 : index
    %c0_34 = arith.constant 0 : index
    %53 = vector.load %arg7[%c0_33, %c0_34] : memref<1x128xf32, #tpu.memory_space<vmem>>, vector<1x128xf32>
    tpu.vector_store %arg7[%c0_33, %c0_34], %52 {strides = array<i32>} : memref<1x128xf32, #tpu.memory_space<vmem>>, vector<1x128xf32>,
    return
  }
  func.func @transform_0(%arg0: i32) -> (i32, i32) {
    %c0_i32 = arith.constant 0 : i32
    %c0_i32_0 = arith.constant 0 : i32
    return %c0_i32, %arg0 : i32, i32
  }
  func.func @transform_1(%arg0: i32) -> (i32, i32) {
    %c0_i32 = arith.constant 0 : i32
    %c0_i32_0 = arith.constant 0 : i32
    %c0_i32_1 = arith.constant 0 : i32
    return %c0_i32, %c0_i32_0 : i32, i32
  }
  func.func @transform_2(%arg0: i32) -> (i32, i32) {
    %c0_i32 = arith.constant 0 : i32
    %c0_i32_0 = arith.constant 0 : i32
    %c0_i32_1 = arith.constant 0 : i32
    return %c0_i32, %c0_i32_0 : i32, i32
  }
  func.func @transform_3(%arg0: i32) -> (i32, i32) {
    %c0_i32 = arith.constant 0 : i32
    %c0_i32_0 = arith.constant 0 : i32
    %c0_i32_1 = arith.constant 0 : i32
    return %c0_i32, %c0_i32_0 : i32, i32
  }
  func.func @transform_4(%arg0: i32) -> (i32, i32) {
    %c0_i32 = arith.constant 0 : i32
    %c0_i32_0 = arith.constant 0 : i32
    %c0_i32_1 = arith.constant 0 : i32
    return %c0_i32, %c0_i32_0 : i32, i32
  }
  func.func @transform_5(%arg0: i32) -> (i32, i32) {
    %c0_i32 = arith.constant 0 : i32
    %c0_i32_0 = arith.constant 0 : i32
    %c0_i32_1 = arith.constant 0 : i32
    return %c0_i32, %c0_i32_0 : i32, i32
  }
  func.func @transform_6(%arg0: i32) -> (i32, i32) {
    %c0_i32 = arith.constant 0 : i32
    %c0_i32_0 = arith.constant 0 : i32
    return %c0_i32, %arg0 : i32, i32
  }
}

</mosaic_0001>

<llo_original>
// kernel: cnn_forward.1
$region0: #{cnn_forward.1}
  #allocation0 [shape = 'u32[]', space=smem, size = 0x4, offset = 0x4, fixed_abs, tag = 'smem constant byte address 0x4 - core index']
  #allocation1 [shape = 'u32[144,128]{1,0:T(1,128)}', space=vmem, size = 0x12000, scoped, tag = 'internal scratch']
  #allocation2 [shape = 'f32[1,1]{1,0:T(1,128)S(1)}', space=vmem, size = 0x200, scoped, tag = 'scoped memory for cnn_forward.1']
  %s0 = inlined_call_operand.vmem [shape: bf16[44,128], index: 0, kind: input, shape index: {}]
  %s1 = inlined_call_operand.vmem [shape: bf16[768,44], index: 1, kind: input, shape index: {}]
  %s2 = inlined_call_operand.vmem [shape: bf16[16,768], index: 2, kind: input, shape index: {}]
  %s3 = inlined_call_operand.vmem [shape: f32[16,1], index: 3, kind: input, shape index: {}]
  %s4 = inlined_call_operand.vmem [shape: f32[16,1], index: 4, kind: input, shape index: {}]
  %s5 = inlined_call_operand.<no memory space> [shape: f32[1,1], index: 5, kind: input, shape index: {}]
  %s6 = inlined_call_operand.vmem [shape: f32[1,128], index: 6, kind: output, shape index: {}]
  %s7 = sld [smem:[#allocation0]]
  $region34: #{cnn_forward.1} parent=0
    _
  %s9 = ssub.s32 1, %s7
  %s10 = scalar_select 0, %s9, %s7
  %v11 = vstv %s5
  %12 = vst [vmem:[#allocation2] sm:$0x1] %v11
  // Predicated region
  $region2: #{cnn_forward.1} parent=0 // pred_check
    _
  $region3: #{cnn_forward.1} parent=0 // pred_check_branch
    %14 = sbr.rel (0) target = $region5
  $region4: #{cnn_forward.1} parent=0 // pred_region
    _
  $region5: #{cnn_forward.1} parent=0 // pred_fallthru
    _
  // Predicated region
  $region6: #{cnn_forward.1} parent=0 // pred_check
    _
  $region7: #{cnn_forward.1} parent=0 // pred_check_branch
    %16 = sbr.rel (0) target = $region9
  $region8: #{cnn_forward.1} parent=0 // pred_region
    _
  $region9: #{cnn_forward.1} parent=0 // pred_fallthru
    _
  // Predicated region
  $region10: #{cnn_forward.1} parent=0 // pred_check
    _
  $region11: #{cnn_forward.1} parent=0 // pred_check_branch
    %18 = sbr.rel (0) target = $region13
  $region12: #{cnn_forward.1} parent=0 // pred_region
    _
  $region13: #{cnn_forward.1} parent=0 // pred_fallthru
    _
  // Predicated region
  $region14: #{cnn_forward.1} parent=0 // pred_check
    _
  $region15: #{cnn_forward.1} parent=0 // pred_check_branch
    %20 = sbr.rel (0) target = $region17
  $region16: #{cnn_forward.1} parent=0 // pred_region
    _
  $region17: #{cnn_forward.1} parent=0 // pred_fallthru
    _
  // Predicated region
  $region18: #{cnn_forward.1} parent=0 // pred_check
    _
  $region19: #{cnn_forward.1} parent=0 // pred_check_branch
    %22 = sbr.rel (0) target = $region21
  $region20: #{cnn_forward.1} parent=0 // pred_region
    _
  $region21: #{cnn_forward.1} parent=0 // pred_fallthru
    _
  // Predicated region
  $region22: #{cnn_forward.1} parent=0 // pred_check
    _
  $region23: #{cnn_forward.1} parent=0 // pred_check_branch
    %24 = sbr.rel (0) target = $region25
  $region24: #{cnn_forward.1} parent=0 // pred_region
    _
  $region25: #{cnn_forward.1} parent=0 // pred_fallthru
    _
  %v26 = vld [vmem:[%s0] sm:$0xf]
  %v27 = vld [vmem:[%s0 + $0x4] sm:$0xf]
  %v28 = vld [vmem:[%s0 + $0x8] sm:$0xf]
  %v29 = vld [vmem:[%s0 + $0xc] sm:$0xf]
  %v30 = vld [vmem:[%s0 + $0x10] sm:$0xf]
  %v31 = vld [vmem:[%s0 + $0x14] sm:$0x3]
  %v32 = vld [vmem:[%s1] sm:$0xf]
  %v33 = vld [vmem:[%s1 + $0x4] sm:$0xf]
  %v34 = vld [vmem:[%s1 + $0x8] sm:$0xf]
  %v35 = vld [vmem:[%s1 + $0xc] sm:$0xf]
  %v36 = vld [vmem:[%s1 + $0x10] sm:$0xf]
  %v37 = vld [vmem:[%s1 + $0x14] sm:$0xf]
  %v38 = vld [vmem:[%s1 + $0x18] sm:$0xf]
  %v39 = vld [vmem:[%s1 + $0x1c] sm:$0xf]
  %v40 = vld [vmem:[%s1 + $0x20] sm:$0xf]
  %v41 = vld [vmem:[%s1 + $0x24] sm:$0xf]
  %v42 = vld [vmem:[%s1 + $0x28] sm:$0xf]
  %v43 = vld [vmem:[%s1 + $0x2c] sm:$0xf]
  %v44 = vld [vmem:[%s1 + $0x30] sm:$0xf]
  %v45 = vld [vmem:[%s1 + $0x34] sm:$0xf]
  %v46 = vld [vmem:[%s1 + $0x38] sm:$0xf]
  %v47 = vld [vmem:[%s1 + $0x3c] sm:$0xf]
  %v48 = vld [vmem:[%s1 + $0x40] sm:$0xf]
  %v49 = vld [vmem:[%s1 + $0x44] sm:$0xf]
  %v50 = vld [vmem:[%s1 + $0x48] sm:$0xf]
  %v51 = vld [vmem:[%s1 + $0x4c] sm:$0xf]
  %v52 = vld [vmem:[%s1 + $0x50] sm:$0xf]
  %v53 = vld [vmem:[%s1 + $0x54] sm:$0xf]
  %v54 = vld [vmem:[%s1 + $0x58] sm:$0xf]
  %v55 = vld [vmem:[%s1 + $0x5c] sm:$0xf]
  %v56 = vld [vmem:[%s1 + $0x60] sm:$0xf]
  %v57 = vld [vmem:[%s1 + $0x64] sm:$0xf]
  %v58 = vld [vmem:[%s1 + $0x68] sm:$0xf]
  %v59 = vld [vmem:[%s1 + $0x6c] sm:$0xf]
  %v60 = vld [vmem:[%s1 + $0x70] sm:$0xf]
  %v61 = vld [vmem:[%s1 + $0x74] sm:$0xf]
  %v62 = vld [vmem:[%s1 + $0x78] sm:$0xf]
  %v63 = vld [vmem:[%s1 + $0x7c] sm:$0xf]
  %v96 = vunpack.c.l.b16 %v32
  %v97 = vunpack.c.l.b16 %v33
  %v98 = vunpack.c.l.b16 %v34
  %v99 = vunpack.c.l.b16 %v35
  %v100 = vunpack.c.l.b16 %v36
  %v101 = vunpack.c.l.b16 %v37
  %v102 = vunpack.c.l.b16 %v38
  %v103 = vunpack.c.l.b16 %v39
  %v104 = vunpack.c.l.b16 %v40
  %v105 = vunpack.c.l.b16 %v41
  %v106 = vunpack.c.l.b16 %v42
  %v107 = vunpack.c.l.b16 %v43
  %v108 = vunpack.c.l.b16 %v44
  %v109 = vunpack.c.l.b16 %v45
  %v110 = vunpack.c.l.b16 %v46
  %v111 = vunpack.c.l.b16 %v47
  %v112 = vunpack.c.l.b16 %v48
  %v113 = vunpack.c.l.b16 %v49
  %v114 = vunpack.c.l.b16 %v50
  %v115 = vunpack.c.l.b16 %v51
  %v116 = vunpack.c.l.b16 %v52
  %v117 = vunpack.c.l.b16 %v53
  %v118 = vunpack.c.l.b16 %v54
  %v119 = vunpack.c.l.b16 %v55
  %v120 = vunpack.c.l.b16 %v56
  %v121 = vunpack.c.l.b16 %v57
  %v122 = vunpack.c.l.b16 %v58
  %v123 = vunpack.c.l.b16 %v59
  %v124 = vunpack.c.l.b16 %v60
  %v125 = vunpack.c.l.b16 %v61
  %v126 = vunpack.c.l.b16 %v62
  %v127 = vunpack.c.l.b16 %v63
  %v128 = vpack.c.b16 %v97, %v96
  %v129 = vpack.c.b16 %v99, %v98
  %v130 = vpack.c.b16 %v101, %v100
  %v131 = vpack.c.b16 %v103, %v102
  %v132 = vpack.c.b16 %v105, %v104
  %v133 = vpack.c.b16 %v107, %v106
  %v134 = vpack.c.b16 %v109, %v108
  %v135 = vpack.c.b16 %v111, %v110
  %v136 = vpack.c.b16 %v113, %v112
  %v137 = vpack.c.b16 %v115, %v114
  %v138 = vpack.c.b16 %v117, %v116
  %v139 = vpack.c.b16 %v119, %v118
  %v140 = vpack.c.b16 %v121, %v120
  %v141 = vpack.c.b16 %v123, %v122
  %v142 = vpack.c.b16 %v125, %v124
  %v143 = vpack.c.b16 %v127, %v126
  %v150 = vunpack.c.l.b16 %v26
  %v151 = vunpack.c.l.b16 %v27
  %v152 = vunpack.c.l.b16 %v28
  %v153 = vunpack.c.l.b16 %v29
  %v154 = vunpack.c.l.b16 %v30
  %v155 = vunpack.c.l.b16 %v31
  %v156 = vpack.c.b16 %v151, %v150
  %v157 = vpack.c.b16 %v153, %v152
  %v158 = vpack.c.b16 %v155, %v154
  %vm161 = vcmask 359424
  %v163 = vsel %vm161, %v128, 0
  %v166 = vsel %vm161, %v129, 0
  %v169 = vsel %vm161, %v130, 0
  %v172 = vsel %vm161, %v131, 0
  %v175 = vsel %vm161, %v132, 0
  %v178 = vsel %vm161, %v133, 0
  %v181 = vsel %vm161, %v134, 0
  %v184 = vsel %vm161, %v135, 0
  %v187 = vsel %vm161, %v136, 0
  %v190 = vsel %vm161, %v137, 0
  %v193 = vsel %vm161, %v138, 0
  %v196 = vsel %vm161, %v139, 0
  %v199 = vsel %vm161, %v140, 0
  %v202 = vsel %vm161, %v141, 0
  %v205 = vsel %vm161, %v142, 0
  %v208 = vsel %vm161, %v143, 0
  %vm210 = vcmask 1045504
  %v212 = vsel %vm210, %v158, 0
  %214 = vmatprep.subr.bf16.mxu0 0
  %215 = vmatpush1.bf16.msra.mxu0 %v156
  %216 = vmatprep.subr.bf16.mxu0 0
  %217 = vmatpush1.bf16.msra.mxu0 %v157
  %218 = vmatprep.subr.bf16.mxu0 0
  %219 = vmatpush1.bf16.msra.mxu0 %v212
  %220 = vmatprep.subr.bf16.mxu0 0
  %221 = vmatpush1.bf16.msra.mxu0 0
  %222 = vmatprep.subr.bf16.mxu0 0
  %223 = vmatpush1.bf16.msra.mxu0 0
  %224 = vmatprep.subr.bf16.mxu0 0
  %225 = vmatpush1.bf16.msra.mxu0 0
  %226 = vmatprep.subr.bf16.mxu0 0
  %227 = vmatpush1.bf16.msra.mxu0 0
  %228 = vmatprep.subr.bf16.mxu0 0
  %229 = vmatpush1.bf16.msra.mxu0 0
  %230 = vmatprep.subr.bf16.mxu0 0
  %231 = vmatpush1.bf16.msra.mxu0 0
  %232 = vmatprep.subr.bf16.mxu0 0
  %233 = vmatpush1.bf16.msra.mxu0 0
  %234 = vmatprep.subr.bf16.mxu0 0
  %235 = vmatpush1.bf16.msra.mxu0 0
  %236 = vmatprep.subr.bf16.mxu0 0
  %237 = vmatpush1.bf16.msra.mxu0 0
  %238 = vmatprep.subr.bf16.mxu0 0
  %239 = vmatpush1.bf16.msra.mxu0 0
  %240 = vmatprep.subr.bf16.mxu0 0
  %241 = vmatpush1.bf16.msra.mxu0 0
  %242 = vmatprep.subr.bf16.mxu0 0
  %243 = vmatpush1.bf16.msra.mxu0 0
  %244 = vmatprep.subr.bf16.mxu0 0
  %245 = vmatpush1.bf16.msra.mxu0 0
  %246 = vmatprep.mubr.bf16.mxu0 0
  %247 = vmatmul.mubr.bf16.gmra.mrb[0].mxu0 %v163
  %v248 = vpop.f32.mrb[0].mxu0
  %v249 = vadd.f32 0.0, %v248
  %v250 = vpop.f32.mrb[0].mxu0
  %v251 = vpop.f32.mrb[0].mxu0
  %v252 = vadd.f32 0.0, %v251
  %v253 = vpop.f32.mrb[0].mxu0
  %254 = vmatprep.mubr.bf16.mxu0 0
  %255 = vmatmul.mubr.bf16.gmra.mrb[0].mxu0 %v166
  %v256 = vpop.f32.mrb[0].mxu0
  %v257 = vadd.f32 0.0, %v256
  %v258 = vpop.f32.mrb[0].mxu0
  %v259 = vpop.f32.mrb[0].mxu0
  %v260 = vadd.f32 0.0, %v259
  %v261 = vpop.f32.mrb[0].mxu0
  %262 = vmatprep.mubr.bf16.mxu0 0
  %263 = vmatmul.mubr.bf16.gmra.mrb[0].mxu0 %v169
  %v264 = vpop.f32.mrb[0].mxu0
  %v265 = vadd.f32 0.0, %v264
  %v266 = vpop.f32.mrb[0].mxu0
  %v267 = vpop.f32.mrb[0].mxu0
  %v268 = vadd.f32 0.0, %v267
  %v269 = vpop.f32.mrb[0].mxu0
  %270 = vmatprep.mubr.bf16.mxu0 0
  %271 = vmatmul.mubr.bf16.gmra.mrb[0].mxu0 %v172
  %v272 = vpop.f32.mrb[0].mxu0
  %v273 = vadd.f32 0.0, %v272
  %v274 = vpop.f32.mrb[0].mxu0
  %v275 = vpop.f32.mrb[0].mxu0
  %v276 = vadd.f32 0.0, %v275
  %v277 = vpop.f32.mrb[0].mxu0
  %278 = vmatprep.mubr.bf16.mxu0 0
  %279 = vmatmul.mubr.bf16.gmra.mrb[0].mxu0 %v175
  %v280 = vpop.f32.mrb[0].mxu0
  %v281 = vadd.f32 0.0, %v280
  %v282 = vpop.f32.mrb[0].mxu0
  %v283 = vpop.f32.mrb[0].mxu0
  %v284 = vadd.f32 0.0, %v283
  %v285 = vpop.f32.mrb[0].mxu0
  %286 = vmatprep.mubr.bf16.mxu0 0
  %287 = vmatmul.mubr.bf16.gmra.mrb[0].mxu0 %v178
  %v288 = vpop.f32.mrb[0].mxu0
  %v289 = vadd.f32 0.0, %v288
  %v290 = vpop.f32.mrb[0].mxu0
  %v291 = vpop.f32.mrb[0].mxu0
  %v292 = vadd.f32 0.0, %v291
  %v293 = vpop.f32.mrb[0].mxu0
  %294 = vmatprep.mubr.bf16.mxu0 0
  %295 = vmatmul.mubr.bf16.gmra.mrb[0].mxu0 %v181
  %v296 = vpop.f32.mrb[0].mxu0
  %v297 = vadd.f32 0.0, %v296
  %v298 = vpop.f32.mrb[0].mxu0
  %v299 = vpop.f32.mrb[0].mxu0
  %v300 = vadd.f32 0.0, %v299
  %v301 = vpop.f32.mrb[0].mxu0
  %302 = vmatprep.mubr.bf16.mxu0 0
  %303 = vmatmul.mubr.bf16.gmra.mrb[0].mxu0 %v184
  %v304 = vpop.f32.mrb[0].mxu0
  %v305 = vadd.f32 0.0, %v304
  %v306 = vpop.f32.mrb[0].mxu0
  %v307 = vpop.f32.mrb[0].mxu0
  %v308 = vadd.f32 0.0, %v307
  %v309 = vpop.f32.mrb[0].mxu0
  %310 = vmatprep.mubr.bf16.mxu0 0
  %311 = vmatmul.mubr.bf16.gmra.mrb[0].mxu0 %v187
  %v312 = vpop.f32.mrb[0].mxu0
  %v313 = vadd.f32 0.0, %v312
  %v314 = vpop.f32.mrb[0].mxu0
  %v315 = vpop.f32.mrb[0].mxu0
  %v316 = vadd.f32 0.0, %v315
  %v317 = vpop.f32.mrb[0].mxu0
  %318 = vmatprep.mubr.bf16.mxu0 0
  %319 = vmatmul.mubr.bf16.gmra.mrb[0].mxu0 %v190
  %v320 = vpop.f32.mrb[0].mxu0
  %v321 = vadd.f32 0.0, %v320
  %v322 = vpop.f32.mrb[0].mxu0
  %v323 = vpop.f32.mrb[0].mxu0
  %v324 = vadd.f32 0.0, %v323
  %v325 = vpop.f32.mrb[0].mxu0
  %326 = vmatprep.mubr.bf16.mxu0 0
  %327 = vmatmul.mubr.bf16.gmra.mrb[0].mxu0 %v193
  %v328 = vpop.f32.mrb[0].mxu0
  %v329 = vadd.f32 0.0, %v328
  %v330 = vpop.f32.mrb[0].mxu0
  %v331 = vpop.f32.mrb[0].mxu0
  %v332 = vadd.f32 0.0, %v331
  %v333 = vpop.f32.mrb[0].mxu0
  %334 = vmatprep.mubr.bf16.mxu0 0
  %335 = vmatmul.mubr.bf16.gmra.mrb[0].mxu0 %v196
  %v336 = vpop.f32.mrb[0].mxu0
  %v337 = vadd.f32 0.0, %v336
  %v338 = vpop.f32.mrb[0].mxu0
  %v339 = vpop.f32.mrb[0].mxu0
  %v340 = vadd.f32 0.0, %v339
  %v341 = vpop.f32.mrb[0].mxu0
  %342 = vmatprep.mubr.bf16.mxu0 0
  %343 = vmatmul.mubr.bf16.gmra.mrb[0].mxu0 %v199
  %v344 = vpop.f32.mrb[0].mxu0
  %v345 = vadd.f32 0.0, %v344
  %v346 = vpop.f32.mrb[0].mxu0
  %v347 = vpop.f32.mrb[0].mxu0
  %v348 = vadd.f32 0.0, %v347
  %v349 = vpop.f32.mrb[0].mxu0
  %350 = vmatprep.mubr.bf16.mxu0 0
  %351 = vmatmul.mubr.bf16.gmra.mrb[0].mxu0 %v202
  %v352 = vpop.f32.mrb[0].mxu0
  %v353 = vadd.f32 0.0, %v352
  %v354 = vpop.f32.mrb[0].mxu0
  %v355 = vpop.f32.mrb[0].mxu0
  %v356 = vadd.f32 0.0, %v355
  %v357 = vpop.f32.mrb[0].mxu0
  %358 = vmatprep.mubr.bf16.mxu0 0
  %359 = vmatmul.mubr.bf16.gmra.mrb[0].mxu0 %v205
  %v360 = vpop.f32.mrb[0].mxu0
  %v361 = vadd.f32 0.0, %v360
  %v362 = vpop.f32.mrb[0].mxu0
  %v363 = vpop.f32.mrb[0].mxu0
  %v364 = vadd.f32 0.0, %v363
  %v365 = vpop.f32.mrb[0].mxu0
  %366 = vmatprep.mubr.bf16.mxu0 0
  %367 = vmatmul.mubr.bf16.gmra.mrb[0].mxu0 %v208
  %v368 = vpop.f32.mrb[0].mxu0
  %v369 = vadd.f32 0.0, %v368
  %v370 = vpop.f32.mrb[0].mxu0
  %v371 = vpop.f32.mrb[0].mxu0
  %v372 = vadd.f32 0.0, %v371
  %v373 = vpop.f32.mrb[0].mxu0
  %374 = vdwg.mxu0
  %v375 = vmax.f32 %v249, 0.0
  %v376 = vmax.f32 %v252, 0.0
  %v377 = vmax.f32 %v257, 0.0
  %v378 = vmax.f32 %v260, 0.0
  %v379 = vmax.f32 %v265, 0.0
  %v380 = vmax.f32 %v268, 0.0
  %v381 = vmax.f32 %v273, 0.0
  %v382 = vmax.f32 %v276, 0.0
  %v383 = vmax.f32 %v281, 0.0
  %v384 = vmax.f32 %v284, 0.0
  %v385 = vmax.f32 %v289, 0.0
  %v386 = vmax.f32 %v292, 0.0
  %v387 = vmax.f32 %v297, 0.0
  %v388 = vmax.f32 %v300, 0.0
  %v389 = vmax.f32 %v305, 0.0
  %v390 = vmax.f32 %v308, 0.0
  %v391 = vmax.f32 %v313, 0.0
  %v392 = vmax.f32 %v316, 0.0
  %v393 = vmax.f32 %v321, 0.0
  %v394 = vmax.f32 %v324, 0.0
  %v395 = vmax.f32 %v329, 0.0
  %v396 = vmax.f32 %v332, 0.0
  %v397 = vmax.f32 %v337, 0.0
  %v398 = vmax.f32 %v340, 0.0
  %v399 = vmax.f32 %v345, 0.0
  %v400 = vmax.f32 %v348, 0.0
  %v401 = vmax.f32 %v353, 0.0
  %v402 = vmax.f32 %v356, 0.0
  %v403 = vmax.f32 %v361, 0.0
  %v404 = vmax.f32 %v364, 0.0
  %v405 = vmax.f32 %v369, 0.0
  %v406 = vmax.f32 %v372, 0.0
  %v407 = vpack.c.bf16 %v376, %v375
  %v408 = vpack.c.bf16 %v378, %v377
  %v409 = vpack.c.bf16 %v380, %v379
  %v410 = vpack.c.bf16 %v382, %v381
  %v411 = vpack.c.bf16 %v384, %v383
  %v412 = vpack.c.bf16 %v386, %v385
  %v413 = vpack.c.bf16 %v388, %v387
  %v414 = vpack.c.bf16 %v390, %v389
  %v415 = vpack.c.bf16 %v392, %v391
  %v416 = vpack.c.bf16 %v394, %v393
  %v417 = vpack.c.bf16 %v396, %v395
  %v418 = vpack.c.bf16 %v398, %v397
  %v419 = vpack.c.bf16 %v400, %v399
  %v420 = vpack.c.bf16 %v402, %v401
  %v421 = vpack.c.bf16 %v404, %v403
  %v422 = vpack.c.bf16 %v406, %v405
  %v423 = vld [vmem:[%s2] sm:$0xff]
  %v424 = vld [vmem:[%s2 + $0x18] sm:$0xff]
  %v425 = vld [vmem:[%s1 + $0x80] sm:$0xf]
  %v426 = vld [vmem:[%s1 + $0x84] sm:$0xf]
  %v427 = vld [vmem:[%s1 + $0x88] sm:$0xf]
  %v428 = vld [vmem:[%s1 + $0x8c] sm:$0xf]
  %v429 = vld [vmem:[%s1 + $0x90] sm:$0xf]
  %v430 = vld [vmem:[%s1 + $0x94] sm:$0xf]
  %v431 = vld [vmem:[%s1 + $0x98] sm:$0xf]
  %v432 = vld [vmem:[%s1 + $0x9c] sm:$0xf]
  %v433 = vld [vmem:[%s1 + $0xa0] sm:$0xf]
  %v434 = vld [vmem:[%s1 + $0xa4] sm:$0xf]
  %v435 = vld [vmem:[%s1 + $0xa8] sm:$0xf]
  %v436 = vld [vmem:[%s1 + $0xac] sm:$0xf]
  %v437 = vld [vmem:[%s1 + $0xb0] sm:$0xf]
  %v438 = vld [vmem:[%s1 + $0xb4] sm:$0xf]
  %v439 = vld [vmem:[%s1 + $0xb8] sm:$0xf]
  %v440 = vld [vmem:[%s1 + $0xbc] sm:$0xf]
  %v441 = vld [vmem:[%s1 + $0xc0] sm:$0xf]
  %v442 = vld [vmem:[%s1 + $0xc4] sm:$0xf]
  %v443 = vld [vmem:[%s1 + $0xc8] sm:$0xf]
  %v444 = vld [vmem:[%s1 + $0xcc] sm:$0xf]
  %v445 = vld [vmem:[%s1 + $0xd0] sm:$0xf]
  %v446 = vld [vmem:[%s1 + $0xd4] sm:$0xf]
  %v447 = vld [vmem:[%s1 + $0xd8] sm:$0xf]
  %v448 = vld [vmem:[%s1 + $0xdc] sm:$0xf]
  %v449 = vld [vmem:[%s1 + $0xe0] sm:$0xf]
  %v450 = vld [vmem:[%s1 + $0xe4] sm:$0xf]
  %v451 = vld [vmem:[%s1 + $0xe8] sm:$0xf]
  %v452 = vld [vmem:[%s1 + $0xec] sm:$0xf]
  %v453 = vld [vmem:[%s1 + $0xf0] sm:$0xf]
  %v454 = vld [vmem:[%s1 + $0xf4] sm:$0xf]
  %v455 = vld [vmem:[%s1 + $0xf8] sm:$0xf]
  %v456 = vld [vmem:[%s1 + $0xfc] sm:$0xf]
  %v489 = vunpack.c.l.b16 %v425
  %v490 = vunpack.c.l.b16 %v426
  %v491 = vunpack.c.l.b16 %v427
  %v492 = vunpack.c.l.b16 %v428
  %v493 = vunpack.c.l.b16 %v429
  %v494 = vunpack.c.l.b16 %v430
  %v495 = vunpack.c.l.b16 %v431
  %v496 = vunpack.c.l.b16 %v432
  %v497 = vunpack.c.l.b16 %v433
  %v498 = vunpack.c.l.b16 %v434
  %v499 = vunpack.c.l.b16 %v435
  %v500 = vunpack.c.l.b16 %v436
  %v501 = vunpack.c.l.b16 %v437
  %v502 = vunpack.c.l.b16 %v438
  %v503 = vunpack.c.l.b16 %v439
  %v504 = vunpack.c.l.b16 %v440
  %v505 = vunpack.c.l.b16 %v441
  %v506 = vunpack.c.l.b16 %v442
  %v507 = vunpack.c.l.b16 %v443
  %v508 = vunpack.c.l.b16 %v444
  %v509 = vunpack.c.l.b16 %v445
  %v510 = vunpack.c.l.b16 %v446
  %v511 = vunpack.c.l.b16 %v447
  %v512 = vunpack.c.l.b16 %v448
  %v513 = vunpack.c.l.b16 %v449
  %v514 = vunpack.c.l.b16 %v450
  %v515 = vunpack.c.l.b16 %v451
  %v516 = vunpack.c.l.b16 %v452
  %v517 = vunpack.c.l.b16 %v453
  %v518 = vunpack.c.l.b16 %v454
  %v519 = vunpack.c.l.b16 %v455
  %v520 = vunpack.c.l.b16 %v456
  %v521 = vpack.c.b16 %v490, %v489
  %v522 = vpack.c.b16 %v492, %v491
  %v523 = vpack.c.b16 %v494, %v493
  %v524 = vpack.c.b16 %v496, %v495
  %v525 = vpack.c.b16 %v498, %v497
  %v526 = vpack.c.b16 %v500, %v499
  %v527 = vpack.c.b16 %v502, %v501
  %v528 = vpack.c.b16 %v504, %v503
  %v529 = vpack.c.b16 %v506, %v505
  %v530 = vpack.c.b16 %v508, %v507
  %v531 = vpack.c.b16 %v510, %v509
  %v532 = vpack.c.b16 %v512, %v511
  %v533 = vpack.c.b16 %v514, %v513
  %v534 = vpack.c.b16 %v516, %v515
  %v535 = vpack.c.b16 %v518, %v517
  %v536 = vpack.c.b16 %v520, %v519
  %v538 = vsel %vm161, %v521, 0
  %v541 = vsel %vm161, %v522, 0
  %v544 = vsel %vm161, %v523, 0
  %v547 = vsel %vm161, %v524, 0
  %v550 = vsel %vm161, %v525, 0
  %v553 = vsel %vm161, %v526, 0
  %v556 = vsel %vm161, %v527, 0
  %v559 = vsel %vm161, %v528, 0
  %v562 = vsel %vm161, %v529, 0
  %v565 = vsel %vm161, %v530, 0
  %v568 = vsel %vm161, %v531, 0
  %v571 = vsel %vm161, %v532, 0
  %v574 = vsel %vm161, %v533, 0
  %v577 = vsel %vm161, %v534, 0
  %v580 = vsel %vm161, %v535, 0
  %v583 = vsel %vm161, %v536, 0
  %585 = vmatprep.subr.bf16.mxu0 0
  %586 = vmatpush1.bf16.msra.mxu0 %v156
  %587 = vmatprep.subr.bf16.mxu0 0
  %588 = vmatpush1.bf16.msra.mxu0 %v157
  %589 = vmatprep.subr.bf16.mxu0 0
  %590 = vmatpush1.bf16.msra.mxu0 %v212
  %591 = vmatprep.subr.bf16.mxu0 0
  %592 = vmatpush1.bf16.msra.mxu0 0
  %593 = vmatprep.subr.bf16.mxu0 0
  %594 = vmatpush1.bf16.msra.mxu0 0
  %595 = vmatprep.subr.bf16.mxu0 0
  %596 = vmatpush1.bf16.msra.mxu0 0
  %597 = vmatprep.subr.bf16.mxu0 0
  %598 = vmatpush1.bf16.msra.mxu0 0
  %599 = vmatprep.subr.bf16.mxu0 0
  %600 = vmatpush1.bf16.msra.mxu0 0
  %601 = vmatprep.subr.bf16.mxu0 0
  %602 = vmatpush1.bf16.msra.mxu0 0
  %603 = vmatprep.subr.bf16.mxu0 0
  %604 = vmatpush1.bf16.msra.mxu0 0
  %605 = vmatprep.subr.bf16.mxu0 0
  %606 = vmatpush1.bf16.msra.mxu0 0
  %607 = vmatprep.subr.bf16.mxu0 0
  %608 = vmatpush1.bf16.msra.mxu0 0
  %609 = vmatprep.subr.bf16.mxu0 0
  %610 = vmatpush1.bf16.msra.mxu0 0
  %611 = vmatprep.subr.bf16.mxu0 0
  %612 = vmatpush1.bf16.msra.mxu0 0
  %613 = vmatprep.subr.bf16.mxu0 0
  %614 = vmatpush1.bf16.msra.mxu0 0
  %615 = vmatprep.subr.bf16.mxu0 0
  %616 = vmatpush1.bf16.msra.mxu0 0
  %617 = vmatprep.mubr.bf16.mxu0 0
  %618 = vmatmul.mubr.bf16.gmra.mrb[0].mxu0 %v538
  %v619 = vpop.f32.mrb[0].mxu0
  %v620 = vadd.f32 0.0, %v619
  %v621 = vpop.f32.mrb[0].mxu0
  %v622 = vpop.f32.mrb[0].mxu0
  %v623 = vadd.f32 0.0, %v622
  %v624 = vpop.f32.mrb[0].mxu0
  %625 = vmatprep.mubr.bf16.mxu0 0
  %626 = vmatmul.mubr.bf16.gmra.mrb[0].mxu0 %v541
  %v627 = vpop.f32.mrb[0].mxu0
  %v628 = vadd.f32 0.0, %v627
  %v629 = vpop.f32.mrb[0].mxu0
  %v630 = vpop.f32.mrb[0].mxu0
  %v631 = vadd.f32 0.0, %v630
  %v632 = vpop.f32.mrb[0].mxu0
  %633 = vmatprep.mubr.bf16.mxu0 0
  %634 = vmatmul.mubr.bf16.gmra.mrb[0].mxu0 %v544
  %v635 = vpop.f32.mrb[0].mxu0
  %v636 = vadd.f32 0.0, %v635
  %v637 = vpop.f32.mrb[0].mxu0
  %v638 = vpop.f32.mrb[0].mxu0
  %v639 = vadd.f32 0.0, %v638
  %v640 = vpop.f32.mrb[0].mxu0
  %641 = vmatprep.mubr.bf16.mxu0 0
  %642 = vmatmul.mubr.bf16.gmra.mrb[0].mxu0 %v547
  %v643 = vpop.f32.mrb[0].mxu0
  %v644 = vadd.f32 0.0, %v643
  %v645 = vpop.f32.mrb[0].mxu0
  %v646 = vpop.f32.mrb[0].mxu0
  %v647 = vadd.f32 0.0, %v646
  %v648 = vpop.f32.mrb[0].mxu0
  %649 = vmatprep.mubr.bf16.mxu0 0
  %650 = vmatmul.mubr.bf16.gmra.mrb[0].mxu0 %v550
  %v651 = vpop.f32.mrb[0].mxu0
  %v652 = vadd.f32 0.0, %v651
  %v653 = vpop.f32.mrb[0].mxu0
  %v654 = vpop.f32.mrb[0].mxu0
  %v655 = vadd.f32 0.0, %v654
  %v656 = vpop.f32.mrb[0].mxu0
  %657 = vmatprep.mubr.bf16.mxu0 0
  %658 = vmatmul.mubr.bf16.gmra.mrb[0].mxu0 %v553
  %v659 = vpop.f32.mrb[0].mxu0
  %v660 = vadd.f32 0.0, %v659
  %v661 = vpop.f32.mrb[0].mxu0
  %v662 = vpop.f32.mrb[0].mxu0
  %v663 = vadd.f32 0.0, %v662
  %v664 = vpop.f32.mrb[0].mxu0
  %665 = vmatprep.mubr.bf16.mxu0 0
  %666 = vmatmul.mubr.bf16.gmra.mrb[0].mxu0 %v556
  %v667 = vpop.f32.mrb[0].mxu0
  %v668 = vadd.f32 0.0, %v667
  %v669 = vpop.f32.mrb[0].mxu0
  %v670 = vpop.f32.mrb[0].mxu0
  %v671 = vadd.f32 0.0, %v670
  %v672 = vpop.f32.mrb[0].mxu0
  %673 = vmatprep.mubr.bf16.mxu0 0
  %674 = vmatmul.mubr.bf16.gmra.mrb[0].mxu0 %v559
  %v675 = vpop.f32.mrb[0].mxu0
  %v676 = vadd.f32 0.0, %v675
  %v677 = vpop.f32.mrb[0].mxu0
  %v678 = vpop.f32.mrb[0].mxu0
  %v679 = vadd.f32 0.0, %v678
  %v680 = vpop.f32.mrb[0].mxu0
  %681 = vmatprep.mubr.bf16.mxu0 0
  %682 = vmatmul.mubr.bf16.gmra.mrb[0].mxu0 %v562
  %v683 = vpop.f32.mrb[0].mxu0
  %v684 = vadd.f32 0.0, %v683
  %v685 = vpop.f32.mrb[0].mxu0
  %v686 = vpop.f32.mrb[0].mxu0
  %v687 = vadd.f32 0.0, %v686
  %v688 = vpop.f32.mrb[0].mxu0
  %689 = vmatprep.mubr.bf16.mxu0 0
  %690 = vmatmul.mubr.bf16.gmra.mrb[0].mxu0 %v565
  %v691 = vpop.f32.mrb[0].mxu0
  %v692 = vadd.f32 0.0, %v691
  %v693 = vpop.f32.mrb[0].mxu0
  %v694 = vpop.f32.mrb[0].mxu0
  %v695 = vadd.f32 0.0, %v694
  %v696 = vpop.f32.mrb[0].mxu0
  %697 = vmatprep.mubr.bf16.mxu0 0
  %698 = vmatmul.mubr.bf16.gmra.mrb[0].mxu0 %v568
  %v699 = vpop.f32.mrb[0].mxu0
  %v700 = vadd.f32 0.0, %v699
  %v701 = vpop.f32.mrb[0].mxu0
  %v702 = vpop.f32.mrb[0].mxu0
  %v703 = vadd.f32 0.0, %v702
  %v704 = vpop.f32.mrb[0].mxu0
  %705 = vmatprep.mubr.bf16.mxu0 0
  %706 = vmatmul.mubr.bf16.gmra.mrb[0].mxu0 %v571
  %v707 = vpop.f32.mrb[0].mxu0
  %v708 = vadd.f32 0.0, %v707
  %v709 = vpop.f32.mrb[0].mxu0
  %v710 = vpop.f32.mrb[0].mxu0
  %v711 = vadd.f32 0.0, %v710
  %v712 = vpop.f32.mrb[0].mxu0
  %713 = vmatprep.mubr.bf16.mxu0 0
  %714 = vmatmul.mubr.bf16.gmra.mrb[0].mxu0 %v574
  %v715 = vpop.f32.mrb[0].mxu0
  %v716 = vadd.f32 0.0, %v715
  %v717 = vpop.f32.mrb[0].mxu0
  %v718 = vpop.f32.mrb[0].mxu0
  %v719 = vadd.f32 0.0, %v718
  %v720 = vpop.f32.mrb[0].mxu0
  %721 = vmatprep.mubr.bf16.mxu0 0
  %722 = vmatmul.mubr.bf16.gmra.mrb[0].mxu0 %v577
  %v723 = vpop.f32.mrb[0].mxu0
  %v724 = vadd.f32 0.0, %v723
  %v725 = vpop.f32.mrb[0].mxu0
  %v726 = vpop.f32.mrb[0].mxu0
  %v727 = vadd.f32 0.0, %v726
  %v728 = vpop.f32.mrb[0].mxu0
  %729 = vmatprep.mubr.bf16.mxu0 0
  %730 = vmatmul.mubr.bf16.gmra.mrb[0].mxu0 %v580
  %v731 = vpop.f32.mrb[0].mxu0
  %v732 = vadd.f32 0.0, %v731
  %v733 = vpop.f32.mrb[0].mxu0
  %v734 = vpop.f32.mrb[0].mxu0
  %v735 = vadd.f32 0.0, %v734
  %v736 = vpop.f32.mrb[0].mxu0
  %737 = vmatprep.mubr.bf16.mxu0 0
  %738 = vmatmul.mubr.bf16.gmra.mrb[0].mxu0 %v583
  %v739 = vpop.f32.mrb[0].mxu0
  %v740 = vadd.f32 0.0, %v739
  %v741 = vpop.f32.mrb[0].mxu0
  %v742 = vpop.f32.mrb[0].mxu0
  %v743 = vadd.f32 0.0, %v742
  %v744 = vpop.f32.mrb[0].mxu0
  %745 = vdwg.mxu0
  %v746 = vmax.f32 %v620, 0.0
  %v747 = vmax.f32 %v623, 0.0
  %v748 = vmax.f32 %v628, 0.0
  %v749 = vmax.f32 %v631, 0.0
  %v750 = vmax.f32 %v636, 0.0
  %v751 = vmax.f32 %v639, 0.0
  %v752 = vmax.f32 %v644, 0.0
  %v753 = vmax.f32 %v647, 0.0
  %v754 = vmax.f32 %v652, 0.0
  %v755 = vmax.f32 %v655, 0.0
  %v756 = vmax.f32 %v660, 0.0
  %v757 = vmax.f32 %v663, 0.0
  %v758 = vmax.f32 %v668, 0.0
  %v759 = vmax.f32 %v671, 0.0
  %v760 = vmax.f32 %v676, 0.0
  %v761 = vmax.f32 %v679, 0.0
  %v762 = vmax.f32 %v684, 0.0
  %v763 = vmax.f32 %v687, 0.0
  %v764 = vmax.f32 %v692, 0.0
  %v765 = vmax.f32 %v695, 0.0
  %v766 = vmax.f32 %v700, 0.0
  %v767 = vmax.f32 %v703, 0.0
  %v768 = vmax.f32 %v708, 0.0
  %v769 = vmax.f32 %v711, 0.0
  %v770 = vmax.f32 %v716, 0.0
  %v771 = vmax.f32 %v719, 0.0
  %v772 = vmax.f32 %v724, 0.0
  %v773 = vmax.f32 %v727, 0.0
  %v774 = vmax.f32 %v732, 0.0
  %v775 = vmax.f32 %v735, 0.0
  %v776 = vmax.f32 %v740, 0.0
  %v777 = vmax.f32 %v743, 0.0
  %v778 = vpack.c.bf16 %v747, %v746
  %v779 = vpack.c.bf16 %v749, %v748
  %v780 = vpack.c.bf16 %v751, %v750
  %v781 = vpack.c.bf16 %v753, %v752
  %v782 = vpack.c.bf16 %v755, %v754
  %v783 = vpack.c.bf16 %v757, %v756
  %v784 = vpack.c.bf16 %v759, %v758
  %v785 = vpack.c.bf16 %v761, %v760
  %v786 = vpack.c.bf16 %v763, %v762
  %v787 = vpack.c.bf16 %v765, %v764
  %v788 = vpack.c.bf16 %v767, %v766
  %v789 = vpack.c.bf16 %v769, %v768
  %v790 = vpack.c.bf16 %v771, %v770
  %v791 = vpack.c.bf16 %v773, %v772
  %v792 = vpack.c.bf16 %v775, %v774
  %v793 = vpack.c.bf16 %v777, %v776
  %v794 = vld [vmem:[%s2 + $0x8] sm:$0xff]
  %v795 = vld [vmem:[%s2 + $0x20] sm:$0xff]
  %v798 = vunpack.c.l.b16 %v794
  %v799 = vunpack.c.h.b16 %v794
  %v800 = vunpack.c.l.b16 %v795
  %v801 = vunpack.c.h.b16 %v795
  %v802 = vpack.c.b16 %v800, %v798
  %v803 = vpack.c.b16 %v801, %v799
  %806 = vmatprep.subr.bf16.mxu0 0
  %807 = vmatpush1.bf16.msra.mxu0 %v778
  %808 = vmatprep.subr.bf16.mxu0 0
  %809 = vmatpush1.bf16.msra.mxu0 %v779
  %810 = vmatprep.subr.bf16.mxu0 0
  %811 = vmatpush1.bf16.msra.mxu0 %v780
  %812 = vmatprep.subr.bf16.mxu0 0
  %813 = vmatpush1.bf16.msra.mxu0 %v781
  %814 = vmatprep.subr.bf16.mxu0 0
  %815 = vmatpush1.bf16.msra.mxu0 %v782
  %816 = vmatprep.subr.bf16.mxu0 0
  %817 = vmatpush1.bf16.msra.mxu0 %v783
  %818 = vmatprep.subr.bf16.mxu0 0
  %819 = vmatpush1.bf16.msra.mxu0 %v784
  %820 = vmatprep.subr.bf16.mxu0 0
  %821 = vmatpush1.bf16.msra.mxu0 %v785
  %822 = vmatprep.subr.bf16.mxu0 0
  %823 = vmatpush1.bf16.msra.mxu0 %v786
  %824 = vmatprep.subr.bf16.mxu0 0
  %825 = vmatpush1.bf16.msra.mxu0 %v787
  %826 = vmatprep.subr.bf16.mxu0 0
  %827 = vmatpush1.bf16.msra.mxu0 %v788
  %828 = vmatprep.subr.bf16.mxu0 0
  %829 = vmatpush1.bf16.msra.mxu0 %v789
  %830 = vmatprep.subr.bf16.mxu0 0
  %831 = vmatpush1.bf16.msra.mxu0 %v790
  %832 = vmatprep.subr.bf16.mxu0 0
  %833 = vmatpush1.bf16.msra.mxu0 %v791
  %834 = vmatprep.subr.bf16.mxu0 0
  %835 = vmatpush1.bf16.msra.mxu0 %v792
  %836 = vmatprep.subr.bf16.mxu0 0
  %837 = vmatpush1.bf16.msra.mxu0 %v793
  %838 = vmatprep.mubr.bf16.mxu0 %v803
  %839 = vmatmul.mubr.bf16.gmra.mrb[0].mxu0 %v802
  %v840 = vpop.f32.mrb[0].mxu0
  %v841 = vadd.f32 0.0, %v840
  %v842 = vpop.f32.mrb[0].mxu0
  %v843 = vpop.f32.mrb[0].mxu0
  %v844 = vadd.f32 0.0, %v843
  %v845 = vpop.f32.mrb[0].mxu0
  %846 = vdwg.mxu0
  %v849 = vunpack.c.l.b16 %v423
  %v850 = vunpack.c.h.b16 %v423
  %v851 = vunpack.c.l.b16 %v424
  %v852 = vunpack.c.h.b16 %v424
  %v853 = vpack.c.b16 %v851, %v849
  %v854 = vpack.c.b16 %v852, %v850
  %857 = vmatprep.subr.bf16.mxu0 0
  %858 = vmatpush1.bf16.msra.mxu0 %v407
  %859 = vmatprep.subr.bf16.mxu0 0
  %860 = vmatpush1.bf16.msra.mxu0 %v408
  %861 = vmatprep.subr.bf16.mxu0 0
  %862 = vmatpush1.bf16.msra.mxu0 %v409
  %863 = vmatprep.subr.bf16.mxu0 0
  %864 = vmatpush1.bf16.msra.mxu0 %v410
  %865 = vmatprep.subr.bf16.mxu0 0
  %866 = vmatpush1.bf16.msra.mxu0 %v411
  %867 = vmatprep.subr.bf16.mxu0 0
  %868 = vmatpush1.bf16.msra.mxu0 %v412
  %869 = vmatprep.subr.bf16.mxu0 0
  %870 = vmatpush1.bf16.msra.mxu0 %v413
  %871 = vmatprep.subr.bf16.mxu0 0
  %872 = vmatpush1.bf16.msra.mxu0 %v414
  %873 = vmatprep.subr.bf16.mxu0 0
  %874 = vmatpush1.bf16.msra.mxu0 %v415
  %875 = vmatprep.subr.bf16.mxu0 0
  %876 = vmatpush1.bf16.msra.mxu0 %v416
  %877 = vmatprep.subr.bf16.mxu0 0
  %878 = vmatpush1.bf16.msra.mxu0 %v417
  %879 = vmatprep.subr.bf16.mxu0 0
  %880 = vmatpush1.bf16.msra.mxu0 %v418
  %881 = vmatprep.subr.bf16.mxu0 0
  %882 = vmatpush1.bf16.msra.mxu0 %v419
  %883 = vmatprep.subr.bf16.mxu0 0
  %884 = vmatpush1.bf16.msra.mxu0 %v420
  %885 = vmatprep.subr.bf16.mxu0 0
  %886 = vmatpush1.bf16.msra.mxu0 %v421
  %887 = vmatprep.subr.bf16.mxu0 0
  %888 = vmatpush1.bf16.msra.mxu0 %v422
  %889 = vmatprep.mubr.bf16.mxu0 %v854
  %890 = vmatmul.mubr.bf16.gmra.mrb[0].mxu0 %v853
  %v891 = vpop.f32.mrb[0].mxu0
  %v892 = vadd.f32 %v841, %v891
  %v893 = vpop.f32.mrb[0].mxu0
  %v894 = vpop.f32.mrb[0].mxu0
  %v895 = vadd.f32 %v844, %v894
  %v896 = vpop.f32.mrb[0].mxu0
  %897 = vdwg.mxu0
  %v898 = vld [vmem:[%s1 + $0x100] sm:$0xf]
  %v899 = vld [vmem:[%s1 + $0x104] sm:$0xf]
  %v900 = vld [vmem:[%s1 + $0x108] sm:$0xf]
  %v901 = vld [vmem:[%s1 + $0x10c] sm:$0xf]
  %v902 = vld [vmem:[%s1 + $0x110] sm:$0xf]
  %v903 = vld [vmem:[%s1 + $0x114] sm:$0xf]
  %v904 = vld [vmem:[%s1 + $0x118] sm:$0xf]
  %v905 = vld [vmem:[%s1 + $0x11c] sm:$0xf]
  %v906 = vld [vmem:[%s1 + $0x120] sm:$0xf]
  %v907 = vld [vmem:[%s1 + $0x124] sm:$0xf]
  %v908 = vld [vmem:[%s1 + $0x128] sm:$0xf]
  %v909 = vld [vmem:[%s1 + $0x12c] sm:$0xf]
  %v910 = vld [vmem:[%s1 + $0x130] sm:$0xf]
  %v911 = vld [vmem:[%s1 + $0x134] sm:$0xf]
  %v912 = vld [vmem:[%s1 + $0x138] sm:$0xf]
  %v913 = vld [vmem:[%s1 + $0x13c] sm:$0xf]
  %v914 = vld [vmem:[%s1 + $0x140] sm:$0xf]
  %v915 = vld [vmem:[%s1 + $0x144] sm:$0xf]
  %v916 = vld [vmem:[%s1 + $0x148] sm:$0xf]
  %v917 = vld [vmem:[%s1 + $0x14c] sm:$0xf]
  %v918 = vld [vmem:[%s1 + $0x150] sm:$0xf]
  %v919 = vld [vmem:[%s1 + $0x154] sm:$0xf]
  %v920 = vld [vmem:[%s1 + $0x158] sm:$0xf]
  %v921 = vld [vmem:[%s1 + $0x15c] sm:$0xf]
  %v922 = vld [vmem:[%s1 + $0x160] sm:$0xf]
  %v923 = vld [vmem:[%s1 + $0x164] sm:$0xf]
  %v924 = vld [vmem:[%s1 + $0x168] sm:$0xf]
  %v925 = vld [vmem:[%s1 + $0x16c] sm:$0xf]
  %v926 = vld [vmem:[%s1 + $0x170] sm:$0xf]
  %v927 = vld [vmem:[%s1 + $0x174] sm:$0xf]
  %v928 = vld [vmem:[%s1 + $0x178] sm:$0xf]
  %v929 = vld [vmem:[%s1 + $0x17c] sm:$0xf]
  %v962 = vunpack.c.l.b16 %v898
  %v963 = vunpack.c.l.b16 %v899
  %v964 = vunpack.c.l.b16 %v900
  %v965 = vunpack.c.l.b16 %v901
  %v966 = vunpack.c.l.b16 %v902
  %v967 = vunpack.c.l.b16 %v903
  %v968 = vunpack.c.l.b16 %v904
  %v969 = vunpack.c.l.b16 %v905
  %v970 = vunpack.c.l.b16 %v906
  %v971 = vunpack.c.l.b16 %v907
  %v972 = vunpack.c.l.b16 %v908
  %v973 = vunpack.c.l.b16 %v909
  %v974 = vunpack.c.l.b16 %v910
  %v975 = vunpack.c.l.b16 %v911
  %v976 = vunpack.c.l.b16 %v912
  %v977 = vunpack.c.l.b16 %v913
  %v978 = vunpack.c.l.b16 %v914
  %v979 = vunpack.c.l.b16 %v915
  %v980 = vunpack.c.l.b16 %v916
  %v981 = vunpack.c.l.b16 %v917
  %v982 = vunpack.c.l.b16 %v918
  %v983 = vunpack.c.l.b16 %v919
  %v984 = vunpack.c.l.b16 %v920
  %v985 = vunpack.c.l.b16 %v921
  %v986 = vunpack.c.l.b16 %v922
  %v987 = vunpack.c.l.b16 %v923
  %v988 = vunpack.c.l.b16 %v924
  %v989 = vunpack.c.l.b16 %v925
  %v990 = vunpack.c.l.b16 %v926
  %v991 = vunpack.c.l.b16 %v927
  %v992 = vunpack.c.l.b16 %v928
  %v993 = vunpack.c.l.b16 %v929
  %v994 = vpack.c.b16 %v963, %v962
  %v995 = vpack.c.b16 %v965, %v964
  %v996 = vpack.c.b16 %v967, %v966
  %v997 = vpack.c.b16 %v969, %v968
  %v998 = vpack.c.b16 %v971, %v970
  %v999 = vpack.c.b16 %v973, %v972
  %v1000 = vpack.c.b16 %v975, %v974
  %v1001 = vpack.c.b16 %v977, %v976
  %v1002 = vpack.c.b16 %v979, %v978
  %v1003 = vpack.c.b16 %v981, %v980
  %v1004 = vpack.c.b16 %v983, %v982
  %v1005 = vpack.c.b16 %v985, %v984
  %v1006 = vpack.c.b16 %v987, %v986
  %v1007 = vpack.c.b16 %v989, %v988
  %v1008 = vpack.c.b16 %v991, %v990
  %v1009 = vpack.c.b16 %v993, %v992
  %v1011 = vsel %vm161, %v994, 0
  %v1014 = vsel %vm161, %v995, 0
  %v1017 = vsel %vm161, %v996, 0
  %v1020 = vsel %vm161, %v997, 0
  %v1023 = vsel %vm161, %v998, 0
  %v1026 = vsel %vm161, %v999, 0
  %v1029 = vsel %vm161, %v1000, 0
  %v1032 = vsel %vm161, %v1001, 0
  %v1035 = vsel %vm161, %v1002, 0
  %v1038 = vsel %vm161, %v1003, 0
  %v1041 = vsel %vm161, %v1004, 0
  %v1044 = vsel %vm161, %v1005, 0
  %v1047 = vsel %vm161, %v1006, 0
  %v1050 = vsel %vm161, %v1007, 0
  %v1053 = vsel %vm161, %v1008, 0
  %v1056 = vsel %vm161, %v1009, 0
  %1058 = vmatprep.subr.bf16.mxu0 0
  %1059 = vmatpush1.bf16.msra.mxu0 %v156
  %1060 = vmatprep.subr.bf16.mxu0 0
  %1061 = vmatpush1.bf16.msra.mxu0 %v157
  %1062 = vmatprep.subr.bf16.mxu0 0
  %1063 = vmatpush1.bf16.msra.mxu0 %v212
  %1064 = vmatprep.subr.bf16.mxu0 0
  %1065 = vmatpush1.bf16.msra.mxu0 0
  %1066 = vmatprep.subr.bf16.mxu0 0
  %1067 = vmatpush1.bf16.msra.mxu0 0
  %1068 = vmatprep.subr.bf16.mxu0 0
  %1069 = vmatpush1.bf16.msra.mxu0 0
  %1070 = vmatprep.subr.bf16.mxu0 0
  %1071 = vmatpush1.bf16.msra.mxu0 0
  %1072 = vmatprep.subr.bf16.mxu0 0
  %1073 = vmatpush1.bf16.msra.mxu0 0
  %1074 = vmatprep.subr.bf16.mxu0 0
  %1075 = vmatpush1.bf16.msra.mxu0 0
  %1076 = vmatprep.subr.bf16.mxu0 0
  %1077 = vmatpush1.bf16.msra.mxu0 0
  %1078 = vmatprep.subr.bf16.mxu0 0
  %1079 = vmatpush1.bf16.msra.mxu0 0
  %1080 = vmatprep.subr.bf16.mxu0 0
  %1081 = vmatpush1.bf16.msra.mxu0 0
  %1082 = vmatprep.subr.bf16.mxu0 0
  %1083 = vmatpush1.bf16.msra.mxu0 0
  %1084 = vmatprep.subr.bf16.mxu0 0
  %1085 = vmatpush1.bf16.msra.mxu0 0
  %1086 = vmatprep.subr.bf16.mxu0 0
  %1087 = vmatpush1.bf16.msra.mxu0 0
  %1088 = vmatprep.subr.bf16.mxu0 0
  %1089 = vmatpush1.bf16.msra.mxu0 0
  %1090 = vmatprep.mubr.bf16.mxu0 0
  %1091 = vmatmul.mubr.bf16.gmra.mrb[0].mxu0 %v1011
  %v1092 = vpop.f32.mrb[0].mxu0
  %v1093 = vadd.f32 0.0, %v1092
  %v1094 = vpop.f32.mrb[0].mxu0
  %v1095 = vpop.f32.mrb[0].mxu0
  %v1096 = vadd.f32 0.0, %v1095
  %v1097 = vpop.f32.mrb[0].mxu0
  %1098 = vmatprep.mubr.bf16.mxu0 0
  %1099 = vmatmul.mubr.bf16.gmra.mrb[0].mxu0 %v1014
  %v1100 = vpop.f32.mrb[0].mxu0
  %v1101 = vadd.f32 0.0, %v1100
  %v1102 = vpop.f32.mrb[0].mxu0
  %v1103 = vpop.f32.mrb[0].mxu0
  %v1104 = vadd.f32 0.0, %v1103
  %v1105 = vpop.f32.mrb[0].mxu0
  %1106 = vmatprep.mubr.bf16.mxu0 0
  %1107 = vmatmul.mubr.bf16.gmra.mrb[0].mxu0 %v1017
  %v1108 = vpop.f32.mrb[0].mxu0
  %v1109 = vadd.f32 0.0, %v1108
  %v1110 = vpop.f32.mrb[0].mxu0
  %v1111 = vpop.f32.mrb[0].mxu0
  %v1112 = vadd.f32 0.0, %v1111
  %v1113 = vpop.f32.mrb[0].mxu0
  %1114 = vmatprep.mubr.bf16.mxu0 0
  %1115 = vmatmul.mubr.bf16.gmra.mrb[0].mxu0 %v1020
  %v1116 = vpop.f32.mrb[0].mxu0
  %v1117 = vadd.f32 0.0, %v1116
  %v1118 = vpop.f32.mrb[0].mxu0
  %v1119 = vpop.f32.mrb[0].mxu0
  %v1120 = vadd.f32 0.0, %v1119
  %v1121 = vpop.f32.mrb[0].mxu0
  %1122 = vmatprep.mubr.bf16.mxu0 0
  %1123 = vmatmul.mubr.bf16.gmra.mrb[0].mxu0 %v1023
  %v1124 = vpop.f32.mrb[0].mxu0
  %v1125 = vadd.f32 0.0, %v1124
  %v1126 = vpop.f32.mrb[0].mxu0
  %v1127 = vpop.f32.mrb[0].mxu0
  %v1128 = vadd.f32 0.0, %v1127
  %v1129 = vpop.f32.mrb[0].mxu0
  %1130 = vmatprep.mubr.bf16.mxu0 0
  %1131 = vmatmul.mubr.bf16.gmra.mrb[0].mxu0 %v1026
  %v1132 = vpop.f32.mrb[0].mxu0
  %v1133 = vadd.f32 0.0, %v1132
  %v1134 = vpop.f32.mrb[0].mxu0
  %v1135 = vpop.f32.mrb[0].mxu0
  %v1136 = vadd.f32 0.0, %v1135
  %v1137 = vpop.f32.mrb[0].mxu0
  %1138 = vmatprep.mubr.bf16.mxu0 0
  %1139 = vmatmul.mubr.bf16.gmra.mrb[0].mxu0 %v1029
  %v1140 = vpop.f32.mrb[0].mxu0
  %v1141 = vadd.f32 0.0, %v1140
  %v1142 = vpop.f32.mrb[0].mxu0
  %v1143 = vpop.f32.mrb[0].mxu0
  %v1144 = vadd.f32 0.0, %v1143
  %v1145 = vpop.f32.mrb[0].mxu0
  %1146 = vmatprep.mubr.bf16.mxu0 0
  %1147 = vmatmul.mubr.bf16.gmra.mrb[0].mxu0 %v1032
  %v1148 = vpop.f32.mrb[0].mxu0
  %v1149 = vadd.f32 0.0, %v1148
  %v1150 = vpop.f32.mrb[0].mxu0
  %v1151 = vpop.f32.mrb[0].mxu0
  %v1152 = vadd.f32 0.0, %v1151
  %v1153 = vpop.f32.mrb[0].mxu0
  %1154 = vmatprep.mubr.bf16.mxu0 0
  %1155 = vmatmul.mubr.bf16.gmra.mrb[0].mxu0 %v1035
  %v1156 = vpop.f32.mrb[0].mxu0
  %v1157 = vadd.f32 0.0, %v1156
  %v1158 = vpop.f32.mrb[0].mxu0
  %v1159 = vpop.f32.mrb[0].mxu0
  %v1160 = vadd.f32 0.0, %v1159
  %v1161 = vpop.f32.mrb[0].mxu0
  %1162 = vmatprep.mubr.bf16.mxu0 0
  %1163 = vmatmul.mubr.bf16.gmra.mrb[0].mxu0 %v1038
  %v1164 = vpop.f32.mrb[0].mxu0
  %v1165 = vadd.f32 0.0, %v1164
  %v1166 = vpop.f32.mrb[0].mxu0
  %v1167 = vpop.f32.mrb[0].mxu0
  %v1168 = vadd.f32 0.0, %v1167
  %v1169 = vpop.f32.mrb[0].mxu0
  %1170 = vmatprep.mubr.bf16.mxu0 0
  %1171 = vmatmul.mubr.bf16.gmra.mrb[0].mxu0 %v1041
  %v1172 = vpop.f32.mrb[0].mxu0
  %v1173 = vadd.f32 0.0, %v1172
  %v1174 = vpop.f32.mrb[0].mxu0
  %v1175 = vpop.f32.mrb[0].mxu0
  %v1176 = vadd.f32 0.0, %v1175
  %v1177 = vpop.f32.mrb[0].mxu0
  %1178 = vmatprep.mubr.bf16.mxu0 0
  %1179 = vmatmul.mubr.bf16.gmra.mrb[0].mxu0 %v1044
  %v1180 = vpop.f32.mrb[0].mxu0
  %v1181 = vadd.f32 0.0, %v1180
  %v1182 = vpop.f32.mrb[0].mxu0
  %v1183 = vpop.f32.mrb[0].mxu0
  %v1184 = vadd.f32 0.0, %v1183
  %v1185 = vpop.f32.mrb[0].mxu0
  %1186 = vmatprep.mubr.bf16.mxu0 0
  %1187 = vmatmul.mubr.bf16.gmra.mrb[0].mxu0 %v1047
  %v1188 = vpop.f32.mrb[0].mxu0
  %v1189 = vadd.f32 0.0, %v1188
  %v1190 = vpop.f32.mrb[0].mxu0
  %v1191 = vpop.f32.mrb[0].mxu0
  %v1192 = vadd.f32 0.0, %v1191
  %v1193 = vpop.f32.mrb[0].mxu0
  %1194 = vmatprep.mubr.bf16.mxu0 0
  %1195 = vmatmul.mubr.bf16.gmra.mrb[0].mxu0 %v1050
  %v1196 = vpop.f32.mrb[0].mxu0
  %v1197 = vadd.f32 0.0, %v1196
  %v1198 = vpop.f32.mrb[0].mxu0
  %v1199 = vpop.f32.mrb[0].mxu0
  %v1200 = vadd.f32 0.0, %v1199
  %v1201 = vpop.f32.mrb[0].mxu0
  %1202 = vmatprep.mubr.bf16.mxu0 0
  %1203 = vmatmul.mubr.bf16.gmra.mrb[0].mxu0 %v1053
  %v1204 = vpop.f32.mrb[0].mxu0
  %v1205 = vadd.f32 0.0, %v1204
  %v1206 = vpop.f32.mrb[0].mxu0
  %v1207 = vpop.f32.mrb[0].mxu0
  %v1208 = vadd.f32 0.0, %v1207
  %v1209 = vpop.f32.mrb[0].mxu0
  %1210 = vmatprep.mubr.bf16.mxu0 0
  %1211 = vmatmul.mubr.bf16.gmra.mrb[0].mxu0 %v1056
  %v1212 = vpop.f32.mrb[0].mxu0
  %v1213 = vadd.f32 0.0, %v1212
  %v1214 = vpop.f32.mrb[0].mxu0
  %v1215 = vpop.f32.mrb[0].mxu0
  %v1216 = vadd.f32 0.0, %v1215
  %v1217 = vpop.f32.mrb[0].mxu0
  %1218 = vdwg.mxu0
  %v1219 = vmax.f32 %v1093, 0.0
  %v1220 = vmax.f32 %v1096, 0.0
  %v1221 = vmax.f32 %v1101, 0.0
  %v1222 = vmax.f32 %v1104, 0.0
  %v1223 = vmax.f32 %v1109, 0.0
  %v1224 = vmax.f32 %v1112, 0.0
  %v1225 = vmax.f32 %v1117, 0.0
  %v1226 = vmax.f32 %v1120, 0.0
  %v1227 = vmax.f32 %v1125, 0.0
  %v1228 = vmax.f32 %v1128, 0.0
  %v1229 = vmax.f32 %v1133, 0.0
  %v1230 = vmax.f32 %v1136, 0.0
  %v1231 = vmax.f32 %v1141, 0.0
  %v1232 = vmax.f32 %v1144, 0.0
  %v1233 = vmax.f32 %v1149, 0.0
  %v1234 = vmax.f32 %v1152, 0.0
  %v1235 = vmax.f32 %v1157, 0.0
  %v1236 = vmax.f32 %v1160, 0.0
  %v1237 = vmax.f32 %v1165, 0.0
  %v1238 = vmax.f32 %v1168, 0.0
  %v1239 = vmax.f32 %v1173, 0.0
  %v1240 = vmax.f32 %v1176, 0.0
  %v1241 = vmax.f32 %v1181, 0.0
  %v1242 = vmax.f32 %v1184, 0.0
  %v1243 = vmax.f32 %v1189, 0.0
  %v1244 = vmax.f32 %v1192, 0.0
  %v1245 = vmax.f32 %v1197, 0.0
  %v1246 = vmax.f32 %v1200, 0.0
  %v1247 = vmax.f32 %v1205, 0.0
  %v1248 = vmax.f32 %v1208, 0.0
  %v1249 = vmax.f32 %v1213, 0.0
  %v1250 = vmax.f32 %v1216, 0.0
  %v1251 = vpack.c.bf16 %v1220, %v1219
  %v1252 = vpack.c.bf16 %v1222, %v1221
  %v1253 = vpack.c.bf16 %v1224, %v1223
  %v1254 = vpack.c.bf16 %v1226, %v1225
  %v1255 = vpack.c.bf16 %v1228, %v1227
  %v1256 = vpack.c.bf16 %v1230, %v1229
  %v1257 = vpack.c.bf16 %v1232, %v1231
  %v1258 = vpack.c.bf16 %v1234, %v1233
  %v1259 = vpack.c.bf16 %v1236, %v1235
  %v1260 = vpack.c.bf16 %v1238, %v1237
  %v1261 = vpack.c.bf16 %v1240, %v1239
  %v1262 = vpack.c.bf16 %v1242, %v1241
  %v1263 = vpack.c.bf16 %v1244, %v1243
  %v1264 = vpack.c.bf16 %v1246, %v1245
  %v1265 = vpack.c.bf16 %v1248, %v1247
  %v1266 = vpack.c.bf16 %v1250, %v1249
  %v1267 = vld [vmem:[%s2 + $0x10] sm:$0xff]
  %v1268 = vld [vmem:[%s2 + $0x28] sm:$0xff]
  %v1271 = vunpack.c.l.b16 %v1267
  %v1272 = vunpack.c.h.b16 %v1267
  %v1273 = vunpack.c.l.b16 %v1268
  %v1274 = vunpack.c.h.b16 %v1268
  %v1275 = vpack.c.b16 %v1273, %v1271
  %v1276 = vpack.c.b16 %v1274, %v1272
  %1279 = vmatprep.subr.bf16.mxu0 0
  %1280 = vmatpush1.bf16.msra.mxu0 %v1251
  %1281 = vmatprep.subr.bf16.mxu0 0
  %1282 = vmatpush1.bf16.msra.mxu0 %v1252
  %1283 = vmatprep.subr.bf16.mxu0 0
  %1284 = vmatpush1.bf16.msra.mxu0 %v1253
  %1285 = vmatprep.subr.bf16.mxu0 0
  %1286 = vmatpush1.bf16.msra.mxu0 %v1254
  %1287 = vmatprep.subr.bf16.mxu0 0
  %1288 = vmatpush1.bf16.msra.mxu0 %v1255
  %1289 = vmatprep.subr.bf16.mxu0 0
  %1290 = vmatpush1.bf16.msra.mxu0 %v1256
  %1291 = vmatprep.subr.bf16.mxu0 0
  %1292 = vmatpush1.bf16.msra.mxu0 %v1257
  %1293 = vmatprep.subr.bf16.mxu0 0
  %1294 = vmatpush1.bf16.msra.mxu0 %v1258
  %1295 = vmatprep.subr.bf16.mxu0 0
  %1296 = vmatpush1.bf16.msra.mxu0 %v1259
  %1297 = vmatprep.subr.bf16.mxu0 0
  %1298 = vmatpush1.bf16.msra.mxu0 %v1260
  %1299 = vmatprep.subr.bf16.mxu0 0
  %1300 = vmatpush1.bf16.msra.mxu0 %v1261
  %1301 = vmatprep.subr.bf16.mxu0 0
  %1302 = vmatpush1.bf16.msra.mxu0 %v1262
  %1303 = vmatprep.subr.bf16.mxu0 0
  %1304 = vmatpush1.bf16.msra.mxu0 %v1263
  %1305 = vmatprep.subr.bf16.mxu0 0
  %1306 = vmatpush1.bf16.msra.mxu0 %v1264
  %1307 = vmatprep.subr.bf16.mxu0 0
  %1308 = vmatpush1.bf16.msra.mxu0 %v1265
  %1309 = vmatprep.subr.bf16.mxu0 0
  %1310 = vmatpush1.bf16.msra.mxu0 %v1266
  %1311 = vmatprep.mubr.bf16.mxu0 %v1276
  %1312 = vmatmul.mubr.bf16.gmra.mrb[0].mxu0 %v1275
  %v1313 = vpop.f32.mrb[0].mxu0
  %v1314 = vadd.f32 0.0, %v1313
  %v1315 = vpop.f32.mrb[0].mxu0
  %v1316 = vpop.f32.mrb[0].mxu0
  %v1317 = vadd.f32 0.0, %v1316
  %v1318 = vpop.f32.mrb[0].mxu0
  %1319 = vdwg.mxu0
  %v1320 = vadd.f32 %v892, %v1314
  %v1321 = vadd.f32 %v895, %v1317
  %v1322 = vld [vmem:[%s3] sm:$0xff]
  %v1323 = vld [vmem:[%s3 + $0x8] sm:$0xff]
  %1325 = vset.pattern.permute.xlu0 0
  %1326 = vperm.xlu0 %1325, %v1322
  %v1327 = vpop.permute.xlu0 %1326
  %1330 = vset.pattern.permute.xlu0 0
  %1331 = vperm.xlu0 %1330, %v1323
  %v1332 = vpop.permute.xlu0 %1331
  %v1334 = vadd.f32 %v1320, %v1327
  %v1335 = vadd.f32 %v1321, %v1332
  %v1336 = vmax.f32 %v1334, 0.0
  %v1337 = vmax.f32 %v1335, 0.0
  %v1338 = vld [vmem:[%s4] sm:$0xff]
  %v1339 = vld [vmem:[%s4 + $0x8] sm:$0xff]
  %1341 = vset.pattern.permute.xlu0 0
  %1342 = vperm.xlu0 %1341, %v1338
  %v1343 = vpop.permute.xlu0 %1342
  %1346 = vset.pattern.permute.xlu0 0
  %1347 = vperm.xlu0 %1346, %v1339
  %v1348 = vpop.permute.xlu0 %1347
  %v1350 = vmul.f32 %v1343, %v1336
  %v1351 = vmul.f32 %v1348, %v1337
  %v1352 = vadd.f32 %v1350, %v1351
  %v1353 = vrot.slane %v1352, 4
  %v1354 = vadd.f32 %v1352, %v1353
  %v1355 = vrot.slane %v1354, 2
  %v1356 = vadd.f32 %v1354, %v1355
  %v1357 = vrot.slane %v1356, 1
  %v1358 = vadd.f32 %v1356, %v1357
  %v1359 = vld [vmem:[#allocation2] sm:$0x1]
  %1361 = vset.pattern.permute.xlu0 0
  %1362 = vperm.xlu0 %1361, %v1359
  %v1363 = vpop.permute.xlu0 %1362
  %v1365 = vlaneseq
  %v1366 = vshrl.u32 %v1365, 7
  %v1367 = vsub.s32 0, %v1366
  %v1368 = vrot.slane %v1363, %v1367
  %v1369 = vadd.f32 %v1358, %v1368
  %v1370 = vand.u32 2147483647, %v1369
  %v1371 = vsub.f32 0.0, %v1370
  %v1372 = vmul.f32 %v1371, 1.442695
  %v1373 = vpow.pop %v1372
  %vm1374 = vcmp.ge.f32.partialorder %v1369, 0.0
  %v1375 = vadd.f32 %v1373, 1.0
  %v1376 = vrcp.pop %v1375
  %v1377 = vmul.f32 1.0, %v1376
  %v1378 = vmul.f32 %v1373, %v1376
  %v1379 = vsel %vm1374, %v1377, %v1378
  %1380 = vst [vmem:[%s6] sm:$0x1] %v1379
  // Predicated region
  $region26: #{cnn_forward.1} parent=0 // pred_check
    _
  $region27: #{cnn_forward.1} parent=0 // pred_check_branch
    %1382 = sbr.rel (0) target = $region29
  $region28: #{cnn_forward.1} parent=0 // pred_region
    _
  $region29: #{cnn_forward.1} parent=0 // pred_fallthru
    _
  // Predicated region
  $region30: #{cnn_forward.1} parent=0 // pred_check
    _
  $region31: #{cnn_forward.1} parent=0 // pred_check_branch
    %1384 = sbr.rel (0) target = $region33
  $region32: #{cnn_forward.1} parent=0 // pred_region
    _
  $region33: #{cnn_forward.1} parent=0 // pred_fallthru
    _

</llo_original>
